<compile_context>
chip_gen: v7x
topology: tpu7x:2x2x1
jax: 0.10.0
libtpu: 0.0.40
codegen_flags: <defaults>
</compile_context>

<pallas_src>
import functools

import jax
import jax.numpy as jnp
from jax.experimental import pallas as pl
from jax.experimental.pallas import tpu as pltpu


def _round_up(x: int, m: int) -> int:
    return (x + m - 1) // m * m


def _vmem_capacity_bytes() -> int:
    """VMEM capacity of the current TPU generation (64 MiB v7x, 128 MiB v5e/v6e)."""
    try:
        return int(pltpu.get_tpu_info().vmem_capacity_bytes)
    except Exception:
        return 64 << 20  # conservative fallback (v7x-sized)


def _pick_tile_m(N, V_pad, want_logits, want_loss, tile_m):
    """Rows per grid step, derived from a per-generation VMEM budget."""
    if tile_m is not None:
        tm = _round_up(int(tile_m), 8)               # keep (8,128) divisibility
    else:
        budget = int(0.60 * _vmem_capacity_bytes())
        # Resident blocks (worst-case double-allocated table) + lse row.
        fixed = 2 * V_pad * V_pad * 4 + 8 * V_pad * 4
        # Per-row, double-buffered VMEM cost.
        per_row = 2 * 512                             # idx tile: (TM,1) i32, lane-padded to 128
        if want_loss:
            per_row += 2 * 512                        # tgt tile
        if want_logits:
            per_row += 2 * V_pad * 4                  # logits writeback tile
        tm = max(budget - fixed, 256 * per_row) // per_row
        tm = min(max(tm, 256), 8192)
        tm -= tm % 256                                # MXU-pass friendly granularity
        # v7x has 2 TensorCores: keep >=2 tiles on the "parallel" axis when possible.
        if N >= 2 * 256:
            tm = min(tm, _round_up(-(-N // 2), 256))
    return min(tm, _round_up(N, 8))


def _make_bigram_kernel(n_valid, want_logits, want_loss):
    """Kernel over one TM-row tile; table and lse row stay VMEM resident across steps."""

    def kernel(*refs):
        if want_loss:
            idx_ref, tgt_ref, table_ref, lse_ref = refs[:4]
            out_refs = refs[4:]
        else:
            idx_ref, table_ref = refs[:2]
            out_refs = refs[2:]
        it = iter(out_refs)
        logits_ref = next(it) if want_logits else None
        part_ref = next(it) if want_loss else None

        i = pl.program_id(0)
        TM = idx_ref.shape[0]
        V = table_ref.shape[1]

        idx = idx_ref[...]                                         # (TM, 1) int32
        col = jax.lax.broadcasted_iota(jnp.int32, (TM, V), 1)      # column ids
        sel = col == idx                                           # (TM, V) bool

        # Embedding gather as one-hot @ table on the MXU (0/1 is exact in bf16 too).
        logits = jnp.dot(sel.astype(table_ref.dtype), table_ref[...],
                         preferred_element_type=jnp.float32)       # (TM, V) f32
        if want_logits:
            logits_ref[...] = logits.astype(logits_ref.dtype)

        if want_loss:
            tgt = tgt_ref[...]                                     # (TM, 1) int32
            # logsumexp(logits_row) == precomputed lse_table[idx_row]; gather it with
            # the already-built one-hot mask — no exp/log/max in the kernel.
            lse = jnp.sum(jnp.where(sel, lse_ref[...], 0.0),
                          axis=-1, keepdims=True)                  # (TM, 1)
            picked = jnp.sum(jnp.where(col == tgt, logits, 0.0),
                             axis=-1, keepdims=True)               # (TM, 1)
            # Mask padded rows (global row >= true N) out of the loss sum.
            row = jax.lax.broadcasted_iota(jnp.int32, (TM, 1), 0) + i * TM
            valid = (row < n_valid).astype(jnp.float32)
            tile_sum = jnp.sum((lse - picked) * valid)             # scalar
            # Lane-dense per-tile partial (avoids masked single-lane stores).
            part_ref[...] = jnp.full((1, 8, 128), tile_sum, dtype=jnp.float32)

    return kernel


@functools.partial(jax.jit,
                   static_argnames=("tile_m", "want_logits", "use_bf16_matmul"))
def bigram_forward(idx, targets, table, *, tile_m=None, want_logits=True,
                   use_bf16_matmul=False):
    """Forward pass of BigramLanguageModel.

    idx: (B, T) int32; targets: (B, T) int32 or None; table: (V, V) float32.
    Returns (logits (B,T,V) f32 or None, loss () f32 or None), matching the PyTorch
    module. want_logits=False is the training fast path that skips the dominant
    logits HBM writeback; use_bf16_matmul=True runs the gather matmul in bf16 (opt-in,
    rounds the logits).
    """
    B, T = idx.shape
    V = table.shape[0]
    N = B * T
    want_loss = targets is not None
    if not (want_logits or want_loss):
        raise ValueError("nothing to compute: want_logits=False and targets=None")

    V_pad = _round_up(max(V, 128), 128)
    TM = _pick_tile_m(N, V_pad, want_logits, want_loss, tile_m)
    num_tiles = -(-N // TM)
    N_pad = num_tiles * TM

    table_dtype = jnp.bfloat16 if use_bf16_matmul else jnp.float32

    # Pad token ids (padded rows use id 0; they are masked out of the loss).
    idx_flat = jnp.zeros((N_pad, 1), jnp.int32).at[:N, 0].set(
        idx.reshape(-1).astype(jnp.int32))

    # Pad the table to lane-dense (V_pad, V_pad); padded rows/cols are never selected
    # by valid ids, so a 0.0 fill is safe (and the lse is precomputed from the true V).
    table_pad = jnp.zeros((V_pad, V_pad), table_dtype).at[:V, :V].set(
        table.astype(table_dtype))

    inputs = [idx_flat]
    in_specs = [pl.BlockSpec((TM, 1), lambda i: (i, 0))]            # idx tile
    if want_loss:
        tgt_flat = jnp.zeros((N_pad, 1), jnp.int32).at[:N, 0].set(
            targets.reshape(-1).astype(jnp.int32))
        inputs.append(tgt_flat)
        in_specs.append(pl.BlockSpec((TM, 1), lambda i: (i, 0)))    # target tile
    inputs.append(table_pad)
    in_specs.append(pl.BlockSpec((V_pad, V_pad), lambda i: (0, 0)))  # table, VMEM-resident
    if want_loss:
        lse_row = jnp.zeros((1, V_pad), jnp.float32).at[0, :V].set(
            jax.scipy.special.logsumexp(table.astype(jnp.float32), axis=-1))
        inputs.append(lse_row)
        in_specs.append(pl.BlockSpec((1, V_pad), lambda i: (0, 0)))  # lse row, resident

    out_shape = []
    out_specs = []
    if want_logits:
        out_shape.append(jax.ShapeDtypeStruct((N_pad, V_pad), jnp.float32))
        out_specs.append(pl.BlockSpec((TM, V_pad), lambda i: (i, 0)))
    if want_loss:
        out_shape.append(jax.ShapeDtypeStruct((num_tiles, 8, 128), jnp.float32))
        out_specs.append(pl.BlockSpec((1, 8, 128), lambda i: (i, 0, 0)))

    # Generation-aware VMEM limit derived from the working set.
    itemsize = 2 if use_bf16_matmul else 4
    working_bytes = (
        (2 * TM * V_pad * 4 if want_logits else 0)        # logits tile, 2x buffered
        + 2 * V_pad * V_pad * itemsize                    # table (worst case 2x alloc)
        + 8 * V_pad * 4                                   # lse row
        + 2 * TM * 512 * (2 if want_loss else 1)          # idx(+tgt) tiles, lane-padded
        + 2 * 8 * 128 * 4                                 # loss partial tiles
    )
    vmem_limit = int(max(16 << 20,
                         min(int(1.5 * working_bytes) + (4 << 20),
                             int(0.70 * _vmem_capacity_bytes()))))

    cost = pl.CostEstimate(
        flops=2 * N_pad * V_pad * V_pad,                  # one-hot @ table
        transcendentals=0,                                # lse precomputed in wrapper
        bytes_accessed=(N_pad * V_pad * 4 if want_logits else 0)
        + V_pad * V_pad * itemsize
        + N_pad * 4 * (2 if want_loss else 1)
        + (num_tiles * 8 * 128 * 4 if want_loss else 0),
    )

    results = pl.pallas_call(
        _make_bigram_kernel(N, want_logits, want_loss),
        grid=(num_tiles,),
        out_shape=tuple(out_shape),
        in_specs=in_specs,
        out_specs=tuple(out_specs),
        compiler_params=pltpu.CompilerParams(
            dimension_semantics=("parallel",),            # shard row tiles across TCs
            vmem_limit_bytes=vmem_limit,
        ),
        cost_estimate=cost,
    )(*inputs)

    if not isinstance(results, (tuple, list)):
        results = (results,)
    it = iter(results)
    logits = None
    loss = None
    if want_logits:
        logits = next(it)[:N, :V].reshape(B, T, V)
    if want_loss:
        loss = jnp.sum(next(it)[:, 0, 0]) / N
    return logits, loss


if __name__ == "__main__":
    key = jax.random.PRNGKey(0)
    k_tab, k_idx, k_tgt = jax.random.split(key, 3)

    vocab_size = 65     # tinyshakespeare-sized vocab (exercises lane padding 65 -> 128)
    B, T = 2, 8

    # nn.Embedding default init: N(0, 1)
    table = jax.random.normal(k_tab, (vocab_size, vocab_size), dtype=jnp.float32)
    idx = jax.random.randint(k_idx, (B, T), 0, vocab_size, dtype=jnp.int32)
    targets = jax.random.randint(k_tgt, (B, T), 0, vocab_size, dtype=jnp.int32)

    # Full forward: logits + loss (matches module.forward(idx, targets)).
    logits, loss = bigram_forward(idx, targets, table)
    jax.block_until_ready((logits, loss))

    # Plain-JAX reference.
    ref_logits = table[idx]                                  # (B, T, V)
    lf = ref_logits.reshape(B * T, vocab_size)
    lse = jax.scipy.special.logsumexp(lf, axis=-1)
    ref_loss = jnp.mean(lse - lf[jnp.arange(B * T), targets.reshape(-1)])
    assert logits.shape == (B, T, vocab_size), "logits shape mismatch"
    assert jnp.allclose(logits, ref_logits, atol=1e-5), "logits mismatch"
    assert jnp.allclose(loss, ref_loss, atol=1e-5), "loss mismatch"

    # Loss-only fast path (training step that discards logits): no logits writeback.
    no_logits, loss2 = bigram_forward(idx, targets, table, want_logits=False)
    jax.block_until_ready(loss2)
    assert no_logits is None
    assert jnp.allclose(loss2, ref_loss, atol=1e-5), "loss-only mismatch"

    # targets=None path (generation): logits only, loss is None.
    logits3, loss3 = bigram_forward(idx, None, table)
    jax.block_until_ready(logits3)
    assert loss3 is None
    assert jnp.allclose(logits3, ref_logits, atol=1e-5), "logits-only mismatch"

    print("KERNEL_OK")
</pallas_src>

<mosaic_0001>
module attributes {stable_mosaic.version = 11 : i64} {
  func.func @kernel(%arg0: i32, %arg1: memref<16x1xi32, #tpu.memory_space<vmem>>, %arg2: memref<16x1xi32, #tpu.memory_space<vmem>>, %arg3: memref<128x128xf32, #tpu.memory_space<vmem>>, %arg4: memref<1x128xf32, #tpu.memory_space<vmem>>, %arg5: memref<16x128xf32, #tpu.memory_space<vmem>>, %arg6: memref<1x8x128xf32, #tpu.memory_space<vmem>>) attributes {dimension_semantics = [#tpu.dimension_semantics<parallel>], iteration_bounds = array<i64: 1>, scalar_prefetch = 0 : i64, scratch_operands = 0 : i64, tpu.core_type = #tpu.core_type<tc>, window_params = [{transform_indices = @transform_0, window_bounds = array<i64: 16, 1>}, {transform_indices = @transform_1, window_bounds = array<i64: 16, 1>}, {pipeline_mode = #tpu.pipeline_mode<synchronous>, transform_indices = @transform_2, window_bounds = array<i64: 128, 128>}, {pipeline_mode = #tpu.pipeline_mode<synchronous>, transform_indices = @transform_3, window_bounds = array<i64: 1, 128>}, {transform_indices = @transform_4, window_bounds = array<i64: 16, 128>}, {transform_indices = @transform_5, window_bounds = array<i64: 1, 8, 128>}]} {
    %c0 = arith.constant 0 : index
    %c0_0 = arith.constant 0 : index
    %0 = vector.load %arg1[%c0, %c0_0] : memref<16x1xi32, #tpu.memory_space<vmem>>, vector<16x1xi32>
    %1 = tpu.iota {dimensions = array<i32: 1>} : vector<16x128xi32>
    %2 = vector.broadcast %0 : vector<16x1xi32> to vector<16x128xi32>
    %3 = arith.cmpi eq, %1, %2 : vector<16x128xi32>
    %4 = arith.extui %3 : vector<16x128xi1> to vector<16x128xi32>
    %5 = arith.sitofp %4 : vector<16x128xi32> to vector<16x128xf32>
    %c0_1 = arith.constant 0 : index
    %c0_2 = arith.constant 0 : index
    %6 = vector.load %arg3[%c0_1, %c0_2] : memref<128x128xf32, #tpu.memory_space<vmem>>, vector<128x128xf32>
    %cst = arith.constant dense<0.000000e+00> : vector<16x128xf32>
    %7 = tpu.matmul %5, %6, %cst {dimension_numbers = #tpu.dot_dimension_numbers<[1], [0], [0], [1], [0, 0, 1, 1], [], []>} : vector<16x128xf32>, vector<128x128xf32>, vector<16x128xf32> -> vector<16x128xf32>
    %c0_3 = arith.constant 0 : index
    %c0_4 = arith.constant 0 : index
    %8 = vector.load %arg5[%c0_3, %c0_4] : memref<16x128xf32, #tpu.memory_space<vmem>>, vector<16x128xf32>
    tpu.vector_store %arg5[%c0_3, %c0_4], %7 {strides = array<i32>} : memref<16x128xf32, #tpu.memory_space<vmem>>, vector<16x128xf32>,
    %c0_5 = arith.constant 0 : index
    %c0_6 = arith.constant 0 : index
    %9 = vector.load %arg2[%c0_5, %c0_6] : memref<16x1xi32, #tpu.memory_space<vmem>>, vector<16x1xi32>
    %c0_7 = arith.constant 0 : index
    %c0_8 = arith.constant 0 : index
    %10 = vector.load %arg4[%c0_7, %c0_8] : memref<1x128xf32, #tpu.memory_space<vmem>>, vector<1x128xf32>
    %cst_9 = arith.constant 0.000000e+00 : f32
    %11 = vector.shape_cast %10 : vector<1x128xf32> to vector<1x128xf32>
    %12 = vector.broadcast %11 : vector<1x128xf32> to vector<16x128xf32>
    %13 = vector.broadcast %cst_9 : f32 to vector<16x128xf32>
    %14 = arith.select %3, %12, %13 : vector<16x128xi1>, vector<16x128xf32>
    %cst_10 = arith.constant dense<0.000000e+00> : vector<16xf32>
    %15 = vector.multi_reduction <add>, %14, %cst_10 [1] : vector<16x128xf32> to vector<16xf32>
    %16 = vector.shape_cast %15 : vector<16xf32> to vector<16x1xf32>
    %17 = vector.broadcast %9 : vector<16x1xi32> to vector<16x128xi32>
    %18 = arith.cmpi eq, %1, %17 : vector<16x128xi32>
    %cst_11 = arith.constant 0.000000e+00 : f32
    %19 = vector.broadcast %cst_11 : f32 to vector<16x128xf32>
    %20 = arith.select %18, %7, %19 : vector<16x128xi1>, vector<16x128xf32>
    %cst_12 = arith.constant dense<0.000000e+00> : vector<16xf32>
    %21 = vector.multi_reduction <add>, %20, %cst_12 [1] : vector<16x128xf32> to vector<16xf32>
    %22 = vector.shape_cast %21 : vector<16xf32> to vector<16x1xf32>
    %23 = tpu.iota {dimensions = array<i32: 0>} : vector<16x1xi32>
    %c16_i32 = arith.constant 16 : i32
    %24 = arith.muli %arg0, %c16_i32 : i32
    %25 = vector.broadcast %24 : i32 to vector<16x1xi32>
    %26 = arith.addi %23, %25 : vector<16x1xi32>
    %c16_i32_13 = arith.constant 16 : i32
    %27 = vector.broadcast %c16_i32_13 : i32 to vector<16x1xi32>
    %28 = arith.cmpi slt, %26, %27 : vector<16x1xi32>
    %29 = arith.extui %28 : vector<16x1xi1> to vector<16x1xi32>
    %30 = arith.sitofp %29 : vector<16x1xi32> to vector<16x1xf32>
    %31 = arith.subf %16, %22 : vector<16x1xf32>
    %32 = arith.mulf %31, %30 : vector<16x1xf32>
    %33 = vector.shape_cast %32 : vector<16x1xf32> to vector<1x16x1xf32>
    %cst_14 = arith.constant dense<0.000000e+00> : vector<1xf32>
    %34 = vector.multi_reduction <add>, %33, %cst_14 [1, 2] : vector<1x16x1xf32> to vector<1xf32>
    %35 = vector.shape_cast %34 : vector<1xf32> to vector<1x1x1xf32>
    %36 = vector.extract %35[0, 0, 0] : f32 from vector<1x1x1xf32>
    %37 = vector.broadcast %36 : f32 to vector<1x8x128xf32>
    %c0_15 = arith.constant 0 : index
    %c0_16 = arith.constant 0 : index
    %c0_17 = arith.constant 0 : index
    %38 = vector.load %arg6[%c0_15, %c0_16, %c0_17] : memref<1x8x128xf32, #tpu.memory_space<vmem>>, vector<1x8x128xf32>
    tpu.vector_store %arg6[%c0_15, %c0_16, %c0_17], %37 {strides = array<i32>} : memref<1x8x128xf32, #tpu.memory_space<vmem>>, vector<1x8x128xf32>,
    return
  }
  func.func @transform_0(%arg0: i32) -> (i32, i32) {
    %c0_i32 = arith.constant 0 : i32
    %c0_i32_0 = arith.constant 0 : i32
    return %arg0, %c0_i32 : i32, i32
  }
  func.func @transform_1(%arg0: i32) -> (i32, i32) {
    %c0_i32 = arith.constant 0 : i32
    %c0_i32_0 = arith.constant 0 : i32
    return %arg0, %c0_i32 : i32, i32
  }
  func.func @transform_2(%arg0: i32) -> (i32, i32) {
    %c0_i32 = arith.constant 0 : i32
    %c0_i32_0 = arith.constant 0 : i32
    %c0_i32_1 = arith.constant 0 : i32
    return %c0_i32, %c0_i32_0 : i32, i32
  }
  func.func @transform_3(%arg0: i32) -> (i32, i32) {
    %c0_i32 = arith.constant 0 : i32
    %c0_i32_0 = arith.constant 0 : i32
    %c0_i32_1 = arith.constant 0 : i32
    return %c0_i32, %c0_i32_0 : i32, i32
  }
  func.func @transform_4(%arg0: i32) -> (i32, i32) {
    %c0_i32 = arith.constant 0 : i32
    %c0_i32_0 = arith.constant 0 : i32
    return %arg0, %c0_i32 : i32, i32
  }
  func.func @transform_5(%arg0: i32) -> (i32, i32, i32) {
    %c0_i32 = arith.constant 0 : i32
    %c0_i32_0 = arith.constant 0 : i32
    %c0_i32_1 = arith.constant 0 : i32
    return %arg0, %c0_i32, %c0_i32_0 : i32, i32, i32
  }
}

</mosaic_0001>

<llo_original>
// kernel: bigram_forward.1
$region0: #{bigram_forward.1}
  #allocation0 [shape = 'u32[]', space=smem, size = 0x4, offset = 0x4, fixed_abs, tag = 'smem constant byte address 0x4 - core index']
  #allocation1 [shape = 'u32[144,128]{1,0:T(1,128)}', space=vmem, size = 0x12000, scoped, tag = 'internal scratch']
  %s0 = inlined_call_operand.vmem [shape: s32[16,1], index: 0, kind: input, shape index: {}]
  %s1 = inlined_call_operand.vmem [shape: s32[16,1], index: 1, kind: input, shape index: {}]
  %s2 = inlined_call_operand.vmem [shape: f32[128,128], index: 2, kind: input, shape index: {}]
  %s3 = inlined_call_operand.vmem [shape: f32[1,128], index: 3, kind: input, shape index: {}]
  %s4 = inlined_call_operand.vmem [shape: f32[16,128], index: 4, kind: output, shape index: {0}]
  %s5 = inlined_call_operand.vmem [shape: f32[1,8,128], index: 5, kind: output, shape index: {1}]
  %6 = xla_tuple %s4, %s5
  %s7 = sld [smem:[#allocation0]]
  $region34: #{bigram_forward.1} parent=0
    _
  %s9 = ssub.s32 1, %s7
  %s10 = scalar_select 0, %s9, %s7
  // Predicated region
  $region2: #{bigram_forward.1} parent=0 // pred_check
    _
  $region3: #{bigram_forward.1} parent=0 // pred_check_branch
    %12 = sbr.rel (0) target = $region5
  $region4: #{bigram_forward.1} parent=0 // pred_region
    _
  $region5: #{bigram_forward.1} parent=0 // pred_fallthru
    _
  // Predicated region
  $region6: #{bigram_forward.1} parent=0 // pred_check
    _
  $region7: #{bigram_forward.1} parent=0 // pred_check_branch
    %14 = sbr.rel (0) target = $region9
  $region8: #{bigram_forward.1} parent=0 // pred_region
    _
  $region9: #{bigram_forward.1} parent=0 // pred_fallthru
    _
  // Predicated region
  $region10: #{bigram_forward.1} parent=0 // pred_check
    _
  $region11: #{bigram_forward.1} parent=0 // pred_check_branch
    %16 = sbr.rel (0) target = $region13
  $region12: #{bigram_forward.1} parent=0 // pred_region
    _
  $region13: #{bigram_forward.1} parent=0 // pred_fallthru
    _
  // Predicated region
  $region14: #{bigram_forward.1} parent=0 // pred_check
    _
  $region15: #{bigram_forward.1} parent=0 // pred_check_branch
    %18 = sbr.rel (0) target = $region17
  $region16: #{bigram_forward.1} parent=0 // pred_region
    _
  $region17: #{bigram_forward.1} parent=0 // pred_fallthru
    _
  %v19 = vld [vmem:[%s0] sm:$0xff]
  %v20 = vld [vmem:[%s0 + $0x8] sm:$0xff]
  %v21 = vlaneseq
  %v22 = vand.u32 %v21, 127
  %23 = vset.pattern.permute.xlu0 0
  %24 = vperm.xlu0 %23, %v19
  %v25 = vpop.permute.xlu0 %24
  %26 = vset.pattern.permute.xlu0 0
  %27 = vperm.xlu0 %26, %v20
  %v28 = vpop.permute.xlu0 %27
  %vm29 = vcmp.eq.s32.totalorder %v22, %v25
  %vm30 = vcmp.eq.s32.totalorder %v22, %v28
  %v31 = vsel %vm29, 1, 0
  %v32 = vsel %vm30, 1, 0
  %v33 = vcvt.s32.f32 %v31
  %v34 = vcvt.s32.f32 %v32
  %v35 = vld [vmem:[%s2] sm:$0xff]
  %v36 = vld [vmem:[%s2 + $0x8] sm:$0xff]
  %v37 = vld [vmem:[%s2 + $0x10] sm:$0xff]
  %v38 = vld [vmem:[%s2 + $0x18] sm:$0xff]
  %v39 = vld [vmem:[%s2 + $0x20] sm:$0xff]
  %v40 = vld [vmem:[%s2 + $0x28] sm:$0xff]
  %v41 = vld [vmem:[%s2 + $0x30] sm:$0xff]
  %v42 = vld [vmem:[%s2 + $0x38] sm:$0xff]
  %v43 = vld [vmem:[%s2 + $0x40] sm:$0xff]
  %v44 = vld [vmem:[%s2 + $0x48] sm:$0xff]
  %v45 = vld [vmem:[%s2 + $0x50] sm:$0xff]
  %v46 = vld [vmem:[%s2 + $0x58] sm:$0xff]
  %v47 = vld [vmem:[%s2 + $0x60] sm:$0xff]
  %v48 = vld [vmem:[%s2 + $0x68] sm:$0xff]
  %v49 = vld [vmem:[%s2 + $0x70] sm:$0xff]
  %v50 = vld [vmem:[%s2 + $0x78] sm:$0xff]
  %51 = vmatprep.subr.mxu0 0.0
  %52 = vmatpush1.msra.mxu0 %v35
  %53 = vmatprep.subr.mxu0 0.0
  %54 = vmatpush1.msra.mxu0 %v36
  %55 = vmatprep.subr.mxu0 0.0
  %56 = vmatpush1.msra.mxu0 %v37
  %57 = vmatprep.subr.mxu0 0.0
  %58 = vmatpush1.msra.mxu0 %v38
  %59 = vmatprep.subr.mxu0 0.0
  %60 = vmatpush1.msra.mxu0 %v39
  %61 = vmatprep.subr.mxu0 0.0
  %62 = vmatpush1.msra.mxu0 %v40
  %63 = vmatprep.subr.mxu0 0.0
  %64 = vmatpush1.msra.mxu0 %v41
  %65 = vmatprep.subr.mxu0 0.0
  %66 = vmatpush1.msra.mxu0 %v42
  %67 = vmatprep.subr.mxu0 0.0
  %68 = vmatpush1.msra.mxu0 %v43
  %69 = vmatprep.subr.mxu0 0.0
  %70 = vmatpush1.msra.mxu0 %v44
  %71 = vmatprep.subr.mxu0 0.0
  %72 = vmatpush1.msra.mxu0 %v45
  %73 = vmatprep.subr.mxu0 0.0
  %74 = vmatpush1.msra.mxu0 %v46
  %75 = vmatprep.subr.mxu0 0.0
  %76 = vmatpush1.msra.mxu0 %v47
  %77 = vmatprep.subr.mxu0 0.0
  %78 = vmatpush1.msra.mxu0 %v48
  %79 = vmatprep.subr.mxu0 0.0
  %80 = vmatpush1.msra.mxu0 %v49
  %81 = vmatprep.subr.mxu0 0.0
  %82 = vmatpush1.msra.mxu0 %v50
  %83 = vmatprep.subr.mxu0 0.0
  %84 = vmatpush1.msra.mxu0 0.0
  %85 = vmatprep.subr.mxu0 0.0
  %86 = vmatpush1.msra.mxu0 0.0
  %87 = vmatprep.subr.mxu0 0.0
  %88 = vmatpush1.msra.mxu0 0.0
  %89 = vmatprep.subr.mxu0 0.0
  %90 = vmatpush1.msra.mxu0 0.0
  %91 = vmatprep.subr.mxu0 0.0
  %92 = vmatpush1.msra.mxu0 0.0
  %93 = vmatprep.subr.mxu0 0.0
  %94 = vmatpush1.msra.mxu0 0.0
  %95 = vmatprep.subr.mxu0 0.0
  %96 = vmatpush1.msra.mxu0 0.0
  %97 = vmatprep.subr.mxu0 0.0
  %98 = vmatpush1.msra.mxu0 0.0
  %99 = vmatprep.subr.mxu0 0.0
  %100 = vmatpush1.msra.mxu0 0.0
  %101 = vmatprep.subr.mxu0 0.0
  %102 = vmatpush1.msra.mxu0 0.0
  %103 = vmatprep.subr.mxu0 0.0
  %104 = vmatpush1.msra.mxu0 0.0
  %105 = vmatprep.subr.mxu0 0.0
  %106 = vmatpush1.msra.mxu0 0.0
  %107 = vmatprep.subr.mxu0 0.0
  %108 = vmatpush1.msra.mxu0 0.0
  %109 = vmatprep.subr.mxu0 0.0
  %110 = vmatpush1.msra.mxu0 0.0
  %111 = vmatprep.subr.mxu0 0.0
  %112 = vmatpush1.msra.mxu0 0.0
  %113 = vmatprep.subr.mxu0 0.0
  %114 = vmatpush1.msra.mxu0 0.0
  %115 = vmatprep.mubr.f32.mxu0 0.0
  %116 = vmatmul.mubr.f32.gmra.mrb[0].mxu0 %v33
  %v117 = vpop.f32.mrb[0].mxu0
  %v118 = vadd.f32 0.0, %v117
  %v119 = vpop.f32.mrb[0].mxu0
  %120 = vmatprep.mubr.f32.mxu0 0.0
  %121 = vmatmul.mubr.f32.gmra.mrb[0].mxu0 %v34
  %v122 = vpop.f32.mrb[0].mxu0
  %v123 = vadd.f32 0.0, %v122
  %v124 = vpop.f32.mrb[0].mxu0
  %125 = vdwg.mxu0
  %126 = vst [vmem:[%s4] sm:$0xff] %v118
  %127 = vst [vmem:[%s4 + $0x8] sm:$0xff] %v123
  %v128 = vld [vmem:[%s1] sm:$0xff]
  %v129 = vld [vmem:[%s1 + $0x8] sm:$0xff]
  %v130 = vld [vmem:[%s3] sm:$0x1]
  %v132 = vlaneseq
  %v133 = vshrl.u32 %v132, 7
  %v134 = vsub.s32 0, %v133
  %v135 = vrot.slane %v130, %v134
  %v137 = vsel %vm29, %v135, 0.0
  %v138 = vsel %vm30, %v135, 0.0
  %139 = vadd.xlane.f32.xlu0 %v137
  %v140 = vpop.xlane.xlu0 %139
  %141 = vadd.xlane.f32.xlu0 %v138
  %v142 = vpop.xlane.xlu0 %141
  %143 = vset.pattern.permute.xlu0 0
  %144 = vperm.xlu0 %143, %v128
  %v145 = vpop.permute.xlu0 %144
  %146 = vset.pattern.permute.xlu0 0
  %147 = vperm.xlu0 %146, %v129
  %v148 = vpop.permute.xlu0 %147
  %vm149 = vcmp.eq.s32.totalorder %v22, %v145
  %vm150 = vcmp.eq.s32.totalorder %v22, %v148
  %v151 = vsel %vm149, %v118, 0.0
  %v152 = vsel %vm150, %v123, 0.0
  %153 = vadd.xlane.f32.xlu0 %v151
  %v154 = vpop.xlane.xlu0 %153
  %155 = vadd.xlane.f32.xlu0 %v152
  %v156 = vpop.xlane.xlu0 %155
  %v157 = vlaneseq
  %v158 = vshrl.u32 %v157, 7
  %v159 = vadd.s32 %v158, 8
  %s160 = smul.u32 0, 16
  %v161 = vstv %s160
  %v162 = vadd.s32 %v158, %v161
  %v163 = vadd.s32 %v159, %v161
  %vm164 = vcmp.lt.s32.totalorder %v162, 16
  %vm165 = vcmp.lt.s32.totalorder %v163, 16
  %v166 = vsel %vm164, 1, 0
  %v167 = vsel %vm165, 1, 0
  %v168 = vcvt.s32.f32 %v166
  %v169 = vcvt.s32.f32 %v167
  %v170 = vsub.f32 %v140, %v154
  %v171 = vsub.f32 %v142, %v156
  %v172 = vmul.f32 %v170, %v168
  %v173 = vmul.f32 %v171, %v169
  %vm174 = vcmask 7168
  %v175 = vsel %vm174, %v172, 0.0
  %v176 = vsel %vm174, %v173, 0.0
  %v177 = vadd.f32 %v175, %v176
  %178 = vadd.xlane.f32.xlu0 %v177
  %v179 = vpop.xlane.xlu0 %178
  %v180 = vrot.slane %v179, 4
  %v181 = vadd.f32 %v179, %v180
  %v182 = vrot.slane %v181, 2
  %v183 = vadd.f32 %v181, %v182
  %v184 = vrot.slane %v183, 1
  %v185 = vadd.f32 %v183, %v184
  %s186 = vtos %v185
  %v187 = vstv %s186
  %188 = vst [vmem:[%s5] sm:$0xff] %v187
  // Predicated region
  $region18: #{bigram_forward.1} parent=0 // pred_check
    _
  $region19: #{bigram_forward.1} parent=0 // pred_check_branch
    %190 = sbr.rel (0) target = $region21
  $region20: #{bigram_forward.1} parent=0 // pred_region
    _
  $region21: #{bigram_forward.1} parent=0 // pred_fallthru
    _
  // Predicated region
  $region22: #{bigram_forward.1} parent=0 // pred_check
    _
  $region23: #{bigram_forward.1} parent=0 // pred_check_branch
    %192 = sbr.rel (0) target = $region25
  $region24: #{bigram_forward.1} parent=0 // pred_region
    _
  $region25: #{bigram_forward.1} parent=0 // pred_fallthru
    _
  // Predicated region
  $region26: #{bigram_forward.1} parent=0 // pred_check
    _
  $region27: #{bigram_forward.1} parent=0 // pred_check_branch
    %194 = sbr.rel (0) target = $region29
  $region28: #{bigram_forward.1} parent=0 // pred_region
    _
  $region29: #{bigram_forward.1} parent=0 // pred_fallthru
    _
  // Predicated region
  $region30: #{bigram_forward.1} parent=0 // pred_check
    _
  $region31: #{bigram_forward.1} parent=0 // pred_check_branch
    %196 = sbr.rel (0) target = $region33
  $region32: #{bigram_forward.1} parent=0 // pred_region
    _
  $region33: #{bigram_forward.1} parent=0 // pred_fallthru
    _

</llo_original>
